<compile_context>
chip_gen: v5e
topology: v5e:2x2
jax: 0.10.0
libtpu: 0.0.40
codegen_flags: <defaults>
</compile_context>

<pallas_src>
import functools

import jax
import jax.numpy as jnp
from jax.experimental import pallas as pl
from jax.experimental.pallas import tpu as pltpu


def _ceil_to(x: int, m: int) -> int:
    return ((x + m - 1) // m) * m


def _sublane_pack(itemsize: int) -> int:
    # rows per physical sublane tile: f32 -> 8, bf16 -> 16, int8/fp8 -> 32
    return 8 * max(1, 4 // itemsize)


def _vmem_capacity_bytes() -> int:
    try:
        info = pltpu.get_tpu_info()
        cap = getattr(info, "vmem_capacity_bytes", None)
        if cap:
            return int(cap)
    except Exception:
        pass
    return 64 << 20  # conservative default (v7x per-TC VMEM)


def _netlin_kernel(w_ref, x_ref, o_ref, *, use_mxu: bool):
    """1x1 conv == channel contraction.

    w_ref: (C_out, C_in) [MXU path] or (C_in, C_out) [VPU path], VMEM-resident.
    x_ref: (NB, C_in, TL) VMEM   (C_in on sublanes, spatial on lanes)
    o_ref: (NB, C_out, TL) VMEM  (lane-dense store)
    """
    nb = x_ref.shape[0]
    if use_mxu:
        w = w_ref[...]  # same dtype as x; bf16 feeds the MXU directly, f32 acc below
        for b in range(nb):  # static unroll, nb <= 8
            y = jnp.dot(w, x_ref[b], preferred_element_type=jnp.float32)
            o_ref[b] = y.astype(o_ref.dtype)
    else:
        # Tiny-channel path: full-vreg VPU multiply + sublane (XLU) reduce.
        wt = w_ref[...].astype(jnp.float32)  # (C_in, C_out)
        c_in, c_out = wt.shape
        for b in range(nb):
            x = x_ref[b].astype(jnp.float32)  # (C_in, TL)
            rows = []
            for co in range(c_out):
                col = wt[:, co : co + 1]  # (C_in, 1), broadcast across lanes
                rows.append(jnp.sum(col * x, axis=0, keepdims=True))  # (1, TL)
            y = rows[0] if c_out == 1 else jnp.concatenate(rows, axis=0)
            o_ref[b] = y.astype(o_ref.dtype)


def netlin_layer(x_nchw, weight):
    """Forward pass of NetLinLayer (1x1 conv, bias-free; dropout inactive at inference).

    x_nchw : (N, C_in, H, W)
    weight : (C_out, C_in) or (C_out, C_in, 1, 1)
    returns: (N, C_out, H, W)
    """
    if weight.ndim == 4:
        weight = weight.reshape(weight.shape[0], weight.shape[1])

    N, C_in, H, W = x_nchw.shape
    C_out = weight.shape[0]
    L = H * W
    dtype = x_nchw.dtype
    itemsize = jnp.dtype(dtype).itemsize

    x3 = x_nchw.reshape(N, C_in, L)  # free view, no HBM transpose pass

    use_mxu = (C_in >= 16) or (C_out >= 16)
    if use_mxu:
        w_arr = weight.astype(dtype)            # (C_out, C_in), MXU operand dtype = x dtype
    else:
        w_arr = weight.astype(jnp.float32).T    # (C_in, C_out) for lane-broadcast VPU path

    # ---- generation-aware tile policy --------------------------------------
    vmem_cap = _vmem_capacity_bytes()
    target_blk = max(2 << 20, vmem_cap // 12)   # per x-block target (larger on 128 MiB chips)
    sub = _sublane_pack(itemsize)
    cin_pad = _ceil_to(C_in, sub)
    cout_pad = _ceil_to(C_out, sub)
    per_sample = cin_pad * L * itemsize

    if per_sample >= target_blk:
        # Large spatial stage: one sample per block, tile the lane axis (multiple of 128).
        nb = 1
        tl = (target_blk // (cin_pad * itemsize)) // 128 * 128
        tl = max(128, min(tl, L))
        if tl >= L:
            tl = L
    else:
        # Small spatial / deep stage: whole (C_in, L) slab, batch several samples per block.
        tl = L
        nb = max(1, min(min(N, 8), target_blk // max(per_sample, 1)))

    # Guarantee >= 2 grid steps whenever possible (v7x has 2 TensorCores).
    if pl.cdiv(N, nb) * pl.cdiv(L, tl) == 1:
        if N >= 2:
            nb = pl.cdiv(N, 2)
        elif L >= 256 and tl == L:
            tl = _ceil_to(pl.cdiv(L, 2), 128)

    n_n = pl.cdiv(N, nb)
    n_l = pl.cdiv(L, tl)

    # ---- VMEM budget (sublane padding + f32 intermediates aware) -----------
    x_blk = nb * cin_pad * tl * itemsize
    o_blk = nb * cout_pad * tl * itemsize
    f32_tmp = nb * _ceil_to(C_out, 8) * tl * 4
    if not use_mxu:
        f32_tmp += nb * _ceil_to(C_in, 8) * tl * 4  # f32 upcast copy of the x tile
    w_bytes = _ceil_to(int(w_arr.shape[0]), 8) * _ceil_to(int(w_arr.shape[1]), 128) * 4
    vmem_needed = 2 * x_blk + 2 * o_blk + f32_tmp + w_bytes + (2 << 20)
    vmem_limit = int(min(max(vmem_needed, 16 << 20), max(vmem_cap * 3 // 4, 16 << 20)))

    cost = pl.CostEstimate(
        flops=int(2 * N * C_out * C_in * L),
        bytes_accessed=int(
            N * C_in * L * itemsize
            + N * C_out * L * itemsize
            + w_arr.size * jnp.dtype(w_arr.dtype).itemsize
        ),
        transcendentals=0,
    )

    kernel = functools.partial(_netlin_kernel, use_mxu=use_mxu)

    out3 = pl.pallas_call(
        kernel,
        out_shape=jax.ShapeDtypeStruct((N, C_out, L), dtype),
        grid=(n_n, n_l),
        in_specs=[
            # Tiny weight matrix: resident VMEM block, same block every grid step.
            pl.BlockSpec((int(w_arr.shape[0]), int(w_arr.shape[1])), lambda n, j: (0, 0)),
            # x block: several batch samples, all channels on sublanes, lane tile on spatial.
            pl.BlockSpec((nb, C_in, tl), lambda n, j: (n, 0, j)),
        ],
        out_specs=pl.BlockSpec((nb, C_out, tl), lambda n, j: (n, 0, j)),
        compiler_params=pltpu.CompilerParams(
            dimension_semantics=("parallel", "parallel"),
            vmem_limit_bytes=vmem_limit,
        ),
        cost_estimate=cost,
    )(w_arr, x3)

    return out3.reshape(N, C_out, H, W)


if __name__ == "__main__":
    key = jax.random.PRNGKey(0)
    k1, k2, k3, k4 = jax.random.split(key, 4)

    # Case 1: module-consistent tiny shapes (NetLinLayer(chn_in=4, chn_out=1)) -> VPU path.
    N, C_in, C_out, H, W = 2, 4, 1, 16, 16
    x = jax.random.normal(k1, (N, C_in, H, W), dtype=jnp.float32)
    w = jax.random.normal(k2, (C_out, C_in), dtype=jnp.float32) * 0.1
    y = netlin_layer(x, w)
    jax.block_until_ready(y)
    y_ref = jnp.einsum("nchw,oc->nohw", x, w, precision="highest")
    assert y.shape == (N, C_out, H, W), y.shape
    assert jnp.allclose(y, y_ref, atol=1e-5, rtol=1e-5), "mismatch vs reference (VPU path)"

    # Case 2: realistic LPIPS channel count (still small spatial) -> MXU path + N-batched blocks.
    N2, C_in2, C_out2, H2, W2 = 2, 64, 1, 16, 16
    x2 = jax.random.normal(k3, (N2, C_in2, H2, W2), dtype=jnp.float32)
    w2 = jax.random.normal(k4, (C_out2, C_in2), dtype=jnp.float32) * 0.05
    y2 = netlin_layer(x2, w2)
    jax.block_until_ready(y2)
    y2_ref = jnp.einsum("nchw,oc->nohw", x2, w2, precision="highest")
    assert jnp.allclose(y2, y2_ref, atol=2e-2, rtol=2e-2), "mismatch vs reference (MXU path)"

    # TODO(synk): nn.Dropout (use_dropout=True) is a training-time op; the inference forward
    # pass has no dropout, so it is intentionally omitted.

    print("KERNEL_OK")
</pallas_src>

<mosaic_0001>
module attributes {stable_mosaic.version = 11 : i64} {
  func.func @_netlin_kernel(%arg0: i32, %arg1: i32, %arg2: memref<4x1xf32, #tpu.memory_space<vmem>>, %arg3: memref<1x4x256xf32, #tpu.memory_space<vmem>>, %arg4: memref<1x1x256xf32, #tpu.memory_space<vmem>>) attributes {dimension_semantics = [#tpu.dimension_semantics<parallel>, #tpu.dimension_semantics<parallel>], iteration_bounds = array<i64: 2, 1>, scalar_prefetch = 0 : i64, scratch_operands = 0 : i64, tpu.core_type = #tpu.core_type<tc>, window_params = [{pipeline_mode = #tpu.pipeline_mode<synchronous>, transform_indices = @transform_0, window_bounds = array<i64: 4, 1>}, {transform_indices = @transform_1, window_bounds = array<i64: 1, 4, 256>}, {transform_indices = @transform_2, window_bounds = array<i64: 1, 1, 256>}]} {
    %c0 = arith.constant 0 : index
    %c0_0 = arith.constant 0 : index
    %0 = vector.load %arg2[%c0, %c0_0] : memref<4x1xf32, #tpu.memory_space<vmem>>, vector<4x1xf32>
    %c0_1 = arith.constant 0 : index
    %c0_2 = arith.constant 0 : index
    %c0_3 = arith.constant 0 : index
    %1 = vector.load %arg3[%c0_1, %c0_2, %c0_3] : memref<1x4x256xf32, #tpu.memory_space<vmem>>, vector<1x4x256xf32>
    %2 = vector.shape_cast %1 : vector<1x4x256xf32> to vector<4x256xf32>
    %3 = vector.broadcast %0 : vector<4x1xf32> to vector<4x256xf32>
    %4 = arith.mulf %3, %2 : vector<4x256xf32>
    %cst = arith.constant dense<0.000000e+00> : vector<256xf32>
    %5 = vector.multi_reduction <add>, %4, %cst [0] : vector<4x256xf32> to vector<256xf32>
    %6 = vector.shape_cast %5 : vector<256xf32> to vector<1x256xf32>
    %c0_4 = arith.constant 0 : index
    %c0_5 = arith.constant 0 : index
    %c0_6 = arith.constant 0 : index
    %7 = vector.load %arg4[%c0_4, %c0_5, %c0_6] : memref<1x1x256xf32, #tpu.memory_space<vmem>>, vector<1x1x256xf32>
    %8 = vector.shape_cast %7 : vector<1x1x256xf32> to vector<1x256xf32>
    %9 = vector.shape_cast %6 : vector<1x256xf32> to vector<1x1x256xf32>
    tpu.vector_store %arg4[%c0_4, %c0_5, %c0_6], %9 {strides = array<i32>} : memref<1x1x256xf32, #tpu.memory_space<vmem>>, vector<1x1x256xf32>,
    return
  }
  func.func @transform_0(%arg0: i32, %arg1: i32) -> (i32, i32) {
    %c0_i32 = arith.constant 0 : i32
    %c0_i32_0 = arith.constant 0 : i32
    %c0_i32_1 = arith.constant 0 : i32
    return %c0_i32, %c0_i32_0 : i32, i32
  }
  func.func @transform_1(%arg0: i32, %arg1: i32) -> (i32, i32, i32) {
    %c0_i32 = arith.constant 0 : i32
    %c0_i32_0 = arith.constant 0 : i32
    return %arg0, %c0_i32, %arg1 : i32, i32, i32
  }
  func.func @transform_2(%arg0: i32, %arg1: i32) -> (i32, i32, i32) {
    %c0_i32 = arith.constant 0 : i32
    %c0_i32_0 = arith.constant 0 : i32
    return %arg0, %c0_i32, %arg1 : i32, i32, i32
  }
}

</mosaic_0001>

<llo_original>
// kernel: tpu_custom_call.1
$region0: #{tpu_custom_call.1}
  #allocation0 [shape = 'u32[]', space=smem, size = 0x4, offset = 0x4, fixed_abs, tag = 'smem constant byte address 0x4 - core index']
  #allocation1 [shape = 'u32[72,128]{1,0:T(1,128)}', space=vmem, size = 0x9000, scoped, tag = 'internal scratch']
  %s0 = inlined_call_operand.vmem [shape: f32[4,1], index: 0, kind: input, shape index: {}]
  %s1 = inlined_call_operand.hbm [shape: f32[2,4,256], index: 1, kind: input, shape index: {}]
  %s2 = inlined_call_operand.hbm [shape: f32[2,1,256], index: 2, kind: output, shape index: {}]
  %s3 = sld [smem:[#allocation0]]
  $region45: #{tpu_custom_call.1} parent=0
    _
  %s5 = ssub.s32 1, %s3
  %s6 = scalar_select 0, %s5, %s3
  $region1: #{tpu_custom_call.1} parent=0
    #allocation2 [shape = 'u8[8192]{0}', space=vmem, size = 0x2000, scoped, tag = 'input window, operand 1']
    #allocation3 [shape = 's32[2]{0}', space=sflag, size = 0x8, scoped, tag = 'scoped memory for tpu_custom_call.1']
    #allocation4 [shape = 's32[2]{0}', space=sflag, size = 0x8, scoped, tag = 'scoped memory for tpu_custom_call.1']
    #allocation5 [shape = 'u8[2048]{0}', space=vmem, size = 0x800, scoped, tag = 'output window, operand 0']
    %7 = vsyncpa [#allocation3], 0
    %s8 = scalar_lea.sflag [#allocation3], 1
    %9 = vsyncpa %s8, 0
    %10 = vsyncpa [#allocation4], 0
    %s11 = scalar_lea.sflag [#allocation4], 1
    %12 = vsyncpa %s11, 0
    loop: start=0, step=1, limit=4
    $region2: #{tpu_custom_call.1} parent=1 // loop_pre_header
      _
    $region3: #{tpu_custom_call.1} parent=1 // loop_header
      %s14 = sphi 0, %s18
      %p15 = scmp.ge.s32.totalorder %s14, 4
      %s21 = sphi 0, %s33
      %s22 = sphi 0, %s29
      %s23 = sphi 0, %s21
      %s24 = sphi 0, %s22
      %s25 = sphi 0, %s23
      %s26 = sphi 0, %s24
      %s34 = sphi 0, %s34
      %s36 = sphi 0, %s34
      %s37 = sphi 0, %s36
      %s51 = sphi 0, %s37
      %s59 = sphi 0, %s61
      %s62 = sphi 0, %s59
      %s63 = sphi 0, %s62
      %s79 = sphi 0, %s63
      %s87 = sphi 0, %s89
      %s90 = sphi 0, %s87
      %s91 = sphi 0, %s90
      %s107 = sphi 0, %s91
    $region4: #{tpu_custom_call.1} parent=1 // loop_header_branch
      %17 = sbr.rel (%p15) target = $region8
    $region5: #{tpu_custom_call.1} parent=1 // loop_body
      %s19 = ssub.s32 %s14, 1
      %s20 = ssub.s32 %s14, 2
      %s27 = sadd.s32 1, %s22
      %p28 = scmp.ge.s32.totalorder %s27, 1
      %s29 = scalar_select %p28, 0, %s27
      %s30 = sadd.s32 1, %s21
      %s31 = scalar_select %p28, %s30, %s21
      %p32 = scmp.ge.s32.totalorder %s31, 2
      %s33 = scalar_select %p32, 0, %s31
      %s35 = sadd.s32 %s34, 1
      %p38 = scmp.eq.s32.totalorder %s14, 1
      %p39 = scmp.ne.s32.totalorder %s34, %s36
      %p40 = scmp.eq.s32.totalorder %s14, 0
      %p41 = por %p39, %p40
      %p42 = scmp.ne.s32.totalorder %s34, %s36
      %p43 = scmp.eq.s32.totalorder %s19, 1
      %p44 = por %p42, %p43
      %p45 = scmp.ne.s32.totalorder %s36, %s37
      %p46 = scmp.eq.s32.totalorder %s19, 0
      %p47 = por %p45, %p46
      %p48 = scmp.ne.s32.totalorder %s36, %s37
      %p49 = scmp.eq.s32.totalorder %s20, 1
      %p50 = por %p48, %p49
      %p52 = scmp.ne.s32.totalorder %s37, %s51
      %p53 = scmp.eq.s32.totalorder %s20, 0
      %p54 = por %p52, %p53
      %s55 = ssub.s32 %s21, %s33
      %s56 = ssub.s32 %s22, %s29
      %s57 = sor.u32 %s55, %s56
      %p58 = scmp.eq.s32.totalorder %s57, 0
      %s60 = sadd.s32 %s59, 1
      %s61 = scalar_select %p58, %s59, %s60
      %p64 = pneg %p58
      %p65 = scmp.eq.s32.totalorder %s14, 1
      %p66 = por %p64, %p65
      %p67 = scmp.ne.s32.totalorder %s59, %s62
      %p68 = scmp.eq.s32.totalorder %s14, 0
      %p69 = por %p67, %p68
      %p70 = scmp.ne.s32.totalorder %s59, %s62
      %p71 = scmp.eq.s32.totalorder %s19, 1
      %p72 = por %p70, %p71
      %p73 = scmp.ne.s32.totalorder %s62, %s63
      %p74 = scmp.eq.s32.totalorder %s19, 0
      %p75 = por %p73, %p74
      %p76 = scmp.ne.s32.totalorder %s62, %s63
      %p77 = scmp.eq.s32.totalorder %s20, 1
      %p78 = por %p76, %p77
      %p80 = scmp.ne.s32.totalorder %s63, %s79
      %p81 = scmp.eq.s32.totalorder %s20, 0
      %p82 = por %p80, %p81
      %s83 = ssub.s32 %s21, %s33
      %s84 = ssub.s32 %s22, %s29
      %s85 = sor.u32 %s83, %s84
      %p86 = scmp.eq.s32.totalorder %s85, 0
      %s88 = sadd.s32 %s87, 1
      %s89 = scalar_select %p86, %s87, %s88
      %p92 = pneg %p86
      %p93 = scmp.eq.s32.totalorder %s14, 1
      %p94 = por %p92, %p93
      %p95 = scmp.ne.s32.totalorder %s87, %s90
      %p96 = scmp.eq.s32.totalorder %s14, 0
      %p97 = por %p95, %p96
      %p98 = scmp.ne.s32.totalorder %s87, %s90
      %p99 = scmp.eq.s32.totalorder %s19, 1
      %p100 = por %p98, %p99
      %p101 = scmp.ne.s32.totalorder %s90, %s91
      %p102 = scmp.eq.s32.totalorder %s19, 0
      %p103 = por %p101, %p102
      %p104 = scmp.ne.s32.totalorder %s90, %s91
      %p105 = scmp.eq.s32.totalorder %s20, 1
      %p106 = por %p104, %p105
      %p108 = scmp.ne.s32.totalorder %s91, %s107
      %p109 = scmp.eq.s32.totalorder %s20, 0
      %p110 = por %p108, %p109
      %p111 = scmp.le.s32.totalorder 1, %s14
      %p112 = scmp.lt.s32.totalorder %s14, 3
      %p113 = pnand %p111, %p112
      %p114 = pneg %p113
      // Predicated region
      $region9: #{tpu_custom_call.1} parent=5 // pred_check
        _
      $region10: #{tpu_custom_call.1} parent=5 // pred_check_branch
        %116 = sbr.rel (%p113) target = $region12
      $region11: #{tpu_custom_call.1} parent=5 // pred_region
        %s117 = ssub.s32 %s14, 1
        // Predicated region
        $region13: #{tpu_custom_call.1} parent=11 // pred_check
          %p118 = pneg %p47
        $region14: #{tpu_custom_call.1} parent=11 // pred_check_branch
          %120 = sbr.rel (%p118) target = $region16
        $region15: #{tpu_custom_call.1} parent=11 // pred_region
          _
        $region16: #{tpu_custom_call.1} parent=11 // pred_fallthru
          _
      $region12: #{tpu_custom_call.1} parent=5 // pred_fallthru
        _
      %p121 = scmp.lt.s32.totalorder %s14, 2
      // Predicated region
      $region17: #{tpu_custom_call.1} parent=5 // pred_check
        %p122 = pneg %p121
      $region18: #{tpu_custom_call.1} parent=5 // pred_check_branch
        %124 = sbr.rel (%p122) target = $region20
      $region19: #{tpu_custom_call.1} parent=5 // pred_region
        // Predicated region
        $region21: #{tpu_custom_call.1} parent=19 // pred_check
          %p125 = pneg %p69
        $region22: #{tpu_custom_call.1} parent=19 // pred_check_branch
          %127 = sbr.rel (%p125) target = $region24
        $region23: #{tpu_custom_call.1} parent=19 // pred_region
          %s128 = sand.u32 %s59, 1
          %s129 = scalar_lea.sflag [#allocation3], %s128
          %s130 = sand.u32 %s59, 1
          %s131 = smul.addr %s130, 8
          %s132 = scalar_lea.vmem [#allocation2], %s131
          %s133 = smul.u32 2, %s22
          %135 = vsyncadd %s129, 0
          %s136 = smul.addr %s21, 2
          %s137 = sadd.s32 %s133, %s136
          %s138 = smul.addr %s137, 4
          %s139 = scalar_lea.hbm %s1, %s138
          %s141 = sshll.u32 %s139, 4
          %s142 = int_to_ptr.hbm [resolvable:$true] %s141
          %s143 = sshll.u32 %s132, 4
          %s144 = int_to_ptr.vmem [resolvable:$true] %s143
          %146 = dma.hbm_to_vmem [thread:$0]  %s142, 128, %s144, %s129
        $region24: #{tpu_custom_call.1} parent=19 // pred_fallthru
          _
      $region20: #{tpu_custom_call.1} parent=5 // pred_fallthru
        _
      %p147 = scmp.le.s32.totalorder 1, %s14
      %p148 = scmp.lt.s32.totalorder %s14, 3
      %p149 = pnand %p147, %p148
      %p150 = pneg %p149
      // Predicated region
      $region25: #{tpu_custom_call.1} parent=5 // pred_check
        _
      $region26: #{tpu_custom_call.1} parent=5 // pred_check_branch
        %152 = sbr.rel (%p149) target = $region28
      $region27: #{tpu_custom_call.1} parent=5 // pred_region
        %s153 = ssub.s32 %s14, 1
        %s154 = sand.u32 %s62, 1
        %s155 = scalar_lea.sflag [#allocation3], %s154
        %s156 = sand.u32 %s62, 1
        %s157 = smul.addr %s156, 8
        %s158 = scalar_lea.vmem [#allocation2], %s157
        // Predicated region
        $region29: #{tpu_custom_call.1} parent=27 // pred_check
          %p159 = pneg %p75
        $region30: #{tpu_custom_call.1} parent=27 // pred_check_branch
          %161 = sbr.rel (%p159) target = $region32
        $region31: #{tpu_custom_call.1} parent=27 // pred_region
          %163 = dma.done %s155, 128
        $region32: #{tpu_custom_call.1} parent=27 // pred_fallthru
          _
        %p164 = pneg %p47
        %p165 = pneg %p44
        %s166 = sand.u32 %s62, 1
        %s167 = scalar_lea.sflag [#allocation3], %s166
        %s168 = sand.u32 %s62, 1
        %s169 = smul.addr %s168, 8
        %s170 = scalar_lea.vmem [#allocation2], %s169
        %p171 = pneg %p75
        %p172 = pneg %p72
        %p173 = pneg %p103
        %p174 = pneg %p100
        %s175 = sand.u32 %s90, 1
        %s176 = scalar_lea.sflag [#allocation4], %s175
        %s177 = sand.u32 %s90, 1
        %s178 = smul.addr %s177, 2
        %s179 = scalar_lea.vmem [#allocation5], %s178
        %s180 = smul.u32 2, %s24
        %s181 = smul.u32 2, %s24
        %v182 = vld [vmem:[%s0] sm:$0xf]
        %v183 = vld [vmem:[%s158] sm:$0xff]
        %185 = vset.pattern.permute.xlu0 0
        %186 = vperm.xlu0 %185, %v182
        %v187 = vpop.permute.xlu0 %186
        %190 = vst [vmem:[#allocation1] ss:$2 sm:$0xff] %v183
        %v191 = vld.sshfl [vmem:[#allocation1] sm:$0xff pattern:$0x75316420]
        %v192 = vld.sshfl [vmem:[#allocation1 + $0x8] sm:$0xff pattern:$0x75316420]
        %v195 = vmul.f32 %v187, %v191
        %v196 = vmul.f32 %v187, %v192
        %vm197 = vcmask 1043456
        %v198 = vsel %vm197, %v195, 0.0
        %v199 = vrot.slane %v198, 4
        %v200 = vadd.f32 %v198, %v199
        %v201 = vrot.slane %v200, 2
        %v202 = vadd.f32 %v200, %v201
        %v203 = vrot.slane %v202, 1
        %v204 = vadd.f32 %v202, %v203
        %v205 = vsel %vm197, %v196, 0.0
        %v206 = vrot.slane %v205, 4
        %v207 = vadd.f32 %v205, %v206
        %v208 = vrot.slane %v207, 2
        %v209 = vadd.f32 %v207, %v208
        %v210 = vrot.slane %v209, 1
        %v211 = vadd.f32 %v209, %v210
        %v214 = vrot.slane %v211, 7
        %vm215 = vcmask 1040384
        %v216 = vsel %vm215, %v204, %v214
        %v218 = vlaneseq
        %vm219 = vcmp.ge.s32.totalorder %v218, 0
        %vm220 = vcmp.lt.s32.totalorder %v218, 256
        %vm221 = vmand %vm219, %vm220
        %222 = vst.msk [vmem:[%s179] sm:$0x3] %vm221, %v216
        %s223 = sand.u32 %s90, 1
        %s224 = scalar_lea.sflag [#allocation4], %s223
        %s225 = sand.u32 %s90, 1
        %s226 = smul.addr %s225, 2
        %s227 = scalar_lea.vmem [#allocation5], %s226
        // Predicated region
        $region33: #{tpu_custom_call.1} parent=27 // pred_check
          %p228 = pneg %p100
        $region34: #{tpu_custom_call.1} parent=27 // pred_check_branch
          %230 = sbr.rel (%p228) target = $region36
        $region35: #{tpu_custom_call.1} parent=27 // pred_region
          %s231 = smul.u32 2, %s24
          %233 = vsyncadd %s224, 0
          %s234 = smul.addr %s23, 2
          %s235 = sadd.s32 %s231, %s234
          %s236 = scalar_lea.hbm %s2, %s235
          %s238 = sshll.u32 %s227, 4
          %s239 = int_to_ptr.vmem [resolvable:$true] %s238
          %s240 = sshll.u32 %s236, 4
          %s241 = int_to_ptr.hbm [resolvable:$true] %s240
          %243 = dma.vmem_to_hbm [thread:$0]  %s239, 32, %s241, %s224
        $region36: #{tpu_custom_call.1} parent=27 // pred_fallthru
          _
      $region28: #{tpu_custom_call.1} parent=5 // pred_fallthru
        _
      %p244 = scmp.le.s32.totalorder 2, %s14
      // Predicated region
      $region37: #{tpu_custom_call.1} parent=5 // pred_check
        %p245 = pneg %p244
      $region38: #{tpu_custom_call.1} parent=5 // pred_check_branch
        %247 = sbr.rel (%p245) target = $region40
      $region39: #{tpu_custom_call.1} parent=5 // pred_region
        %s248 = ssub.s32 %s14, 2
        // Predicated region
        $region41: #{tpu_custom_call.1} parent=39 // pred_check
          %p249 = pneg %p106
        $region42: #{tpu_custom_call.1} parent=39 // pred_check_branch
          %251 = sbr.rel (%p249) target = $region44
        $region43: #{tpu_custom_call.1} parent=39 // pred_region
          %s252 = sand.u32 %s91, 1
          %s253 = scalar_lea.sflag [#allocation4], %s252
          %s254 = sand.u32 %s91, 1
          %s255 = smul.addr %s254, 2
          %s256 = scalar_lea.vmem [#allocation5], %s255
          %258 = dma.done %s253, 32
        $region44: #{tpu_custom_call.1} parent=39 // pred_fallthru
          _
      $region40: #{tpu_custom_call.1} parent=5 // pred_fallthru
        _
    $region6: #{tpu_custom_call.1} parent=1 // loop_footer
      %s18 = sadd.s32 1, %s14
    $region7: #{tpu_custom_call.1} parent=1 // loop_footer_branch
      %13 = sbr.rel target = $region3
    $region8: #{tpu_custom_call.1} parent=1 // loop_exit
      _
    %259 = vsyncpa [#allocation3], 1
    %s260 = scalar_lea.sflag [#allocation3], 1
    %261 = vsyncpa %s260, 1
    %262 = vsyncpa [#allocation4], 1
    %s263 = scalar_lea.sflag [#allocation4], 1
    %264 = vsyncpa %s263, 1

</llo_original>
